<compile_context>
chip_gen: v7x
topology: tpu7x:2x2x1
jax: 0.10.0
libtpu: 0.0.40
codegen_flags: <defaults>
</compile_context>

<pallas_src>
import functools

import jax
import jax.numpy as jnp
from jax.experimental import pallas as pl
from jax.experimental.pallas import tpu as pltpu

_EPS = 1e-8            # torch.cosine_similarity default eps
_LANE = 128
_SUBLANE = 8
_TILE_D_MAX = 65536            # cap on reduction-tile width (columns of x / rows of bank)
_TILE_N_SINGLE_MAX = 2048      # banks up to this many patterns use a single lane-tile
_TILE_N_SPLIT = 1024           # lane-tile width when the N axis is split across grid steps


def _round_up(x: int, m: int) -> int:
    return ((x + m - 1) // m) * m


def _cdiv(a: int, b: int) -> int:
    return -(-a // b)


def _tpu_vmem_capacity_bytes() -> int:
    """Per-core VMEM capacity; conservative 64 MiB (v7x) fallback if the query fails."""
    try:
        info = pltpu.get_tpu_info()
        cap = int(getattr(info, "vmem_capacity_bytes", 0))
        if cap > 0:
            return cap
    except Exception:
        pass
    return 64 * 1024 * 1024


def _vmem_plan():
    """(double-buffered tile working-set budget, Mosaic vmem_limit_bytes)."""
    cap = _tpu_vmem_capacity_bytes()
    return cap // 2, (cap * 9) // 10


def _choose_tiling(n: int, d: int, itemsize: int):
    """Pick (tile_n, n_pad, tile_d, d_pad, vmem_limit) sized from this chip's VMEM."""
    budget, vmem_limit = _vmem_plan()

    # --- N (lane) tiling: single tile for modest banks, 128-multiple tiles for huge banks.
    n_pad8 = _round_up(max(n, 1), _SUBLANE)
    if n_pad8 <= _TILE_N_SINGLE_MAX:
        tile_n, n_pad = n_pad8, n_pad8
    else:
        n_pad128 = _round_up(n, _LANE)
        n_grid = _cdiv(n_pad128, _TILE_N_SPLIT)
        tile_n = _round_up(_cdiv(n_pad128, n_grid), _LANE)
        n_pad = tile_n * n_grid

    # --- D (reduction) tiling: biggest tile that keeps the double-buffered working set
    #     (P tile + x tile) inside the per-generation VMEM budget.
    d128 = _round_up(max(d, 1), _LANE)
    per_col = 2 * tile_n * itemsize + 2 * _SUBLANE * 4     # 2 bufs of P-col + x-col (f32, sublane-padded)
    tile_d_cap = max(_LANE, min(_TILE_D_MAX, (budget // per_col) // _LANE * _LANE))
    d_grid = _cdiv(d128, tile_d_cap)
    tile_d = _round_up(_cdiv(d128, d_grid), _LANE)
    d_pad = tile_d * d_grid
    return tile_n, n_pad, tile_d, d_pad, int(vmem_limit)


def _cosine_sim_kernel(x_ref, p_ref, psq_ref, sims_ref, dots_acc, x2_acc):
    """One (N-tile, D-tile) grid step of the cosine-similarity reduction.

    x_ref:    (1, TILE_D)       f32   query tile
    p_ref:    (TILE_D, TILE_N)  bank  pattern tile (bank is stored transposed: (D, N))
    psq_ref:  (1, TILE_N)       f32   precomputed ||p_i||^2
    sims_ref: (1, TILE_N)       f32   output (written on the last D-tile only)
    dots_acc: (1, TILE_N)       f32   VMEM scratch accumulator for dot(x, p_i)
    x2_acc:   (1, 1)            f32   VMEM scratch accumulator for ||x||^2
    """
    k = pl.program_id(1)          # D axis (reduction) — innermost grid axis

    @pl.when(k == 0)
    def _init():
        dots_acc[...] = jnp.zeros_like(dots_acc)
        x2_acc[...] = jnp.zeros_like(x2_acc)

    x = x_ref[...]                # (1, TILE_D) f32
    p = p_ref[...]                # (TILE_D, TILE_N) bank dtype (bf16 default)

    # MXU: (1, TILE_D) @ (TILE_D, TILE_N) -> (1, TILE_N), f32 accumulation.
    # Natural A@B orientation (contract lhs last dim with rhs first dim): no tile transpose.
    precision = (jax.lax.Precision.HIGHEST if p.dtype == jnp.float32
                 else jax.lax.Precision.DEFAULT)
    dots_acc[...] += jax.lax.dot_general(
        x.astype(p.dtype), p,
        dimension_numbers=(((1,), (0,)), ((), ())),
        preferred_element_type=jnp.float32,
        precision=precision,
    )
    # ||x||^2 partial on the VPU/XLU (overlaps with the MXU op above), from the f32 x.
    x2_acc[...] += jnp.sum(x * x, keepdims=True)

    @pl.when(k == pl.num_programs(1) - 1)
    def _finalize():
        # torch: dot / sqrt(clamp_min(||x||^2 * ||p||^2, eps^2))
        denom_sq = jnp.maximum(x2_acc[...] * psq_ref[...], _EPS * _EPS)
        sims_ref[...] = dots_acc[...] * jax.lax.rsqrt(denom_sq)


def _pallas_cosine_sims(x_row, bank, psq, *, tile_d, tile_n, vmem_limit):
    """x_row: (1, D_pad) f32; bank: (D_pad, N_pad); psq: (1, N_pad) f32 -> sims (N_pad,) f32."""
    d_pad, n_pad = bank.shape
    grid = (n_pad // tile_n, d_pad // tile_d)     # (parallel N, reduction D)
    sims = pl.pallas_call(
        _cosine_sim_kernel,
        out_shape=jax.ShapeDtypeStruct((1, n_pad), jnp.float32),
        grid_spec=pltpu.PrefetchScalarGridSpec(
            num_scalar_prefetch=0,
            grid=grid,
            in_specs=[
                pl.BlockSpec((1, tile_d), lambda j, k: (0, k)),          # x tile
                pl.BlockSpec((tile_d, tile_n), lambda j, k: (k, j)),     # bank tile (D, N)
                pl.BlockSpec((1, tile_n), lambda j, k: (0, j)),          # ||p||^2 (resident over k)
            ],
            out_specs=pl.BlockSpec((1, tile_n), lambda j, k: (0, j)),    # resident, lane-dense
            scratch_shapes=[
                pltpu.VMEM((1, tile_n), jnp.float32),   # dot-product accumulator
                pltpu.VMEM((1, 1), jnp.float32),        # ||x||^2 accumulator
            ],
        ),
        compiler_params=pltpu.CompilerParams(
            dimension_semantics=("parallel", "arbitrary"),   # N parallel (megacore), D reduction
            vmem_limit_bytes=int(vmem_limit),
        ),
    )(x_row, bank, psq)
    return sims[0]


@functools.partial(jax.jit,
                   static_argnames=("n", "d_pad", "tile_d", "tile_n", "vmem_limit"))
def _retrieve(x_flat, bank, psq, *, n, d_pad, tile_d, tile_n, vmem_limit):
    """Single-dispatch query: pad x, run the Pallas kernel, fold in mean + argmax."""
    d = x_flat.shape[1]
    x_row = x_flat if d == d_pad else jnp.pad(x_flat, ((0, 0), (0, d_pad - d)))
    sims_padded = _pallas_cosine_sims(x_row, bank, psq, tile_d=tile_d,
                                      tile_n=tile_n, vmem_limit=vmem_limit)
    sims = sims_padded[:n]
    return sims, jnp.mean(sims), jnp.argmax(sims)


class Net:
    """JAX/Pallas port of the PyTorch Net (pattern memory + cosine retrieval)."""

    def __init__(self, pattern_dtype=jnp.bfloat16):
        # bf16 bank halves HBM traffic (the kernel is bandwidth-bound); pass jnp.float32
        # to match torch-f32 numerics bit-for-bit.
        self.patterns = []
        self.key_classes = []
        self._pattern_dtype = pattern_dtype
        self._bank = None          # cached padded bank (built once per add())

    def add(self, key, key_class):
        self.patterns.append(jnp.asarray(key, dtype=jnp.float32))
        self.key_classes.append(key_class)
        self._bank = None          # invalidate cached bank

    # ---- bank construction (done once per add(), not per forward) -----------
    def _build_bank(self, d):
        n = len(self.patterns)
        itemsize = jnp.dtype(self._pattern_dtype).itemsize
        tile_n, n_pad, tile_d, d_pad, vmem_limit = _choose_tiling(n, d, itemsize)

        p_mat = jnp.stack([p.reshape(d) for p in self.patterns], axis=0)      # (n, d) f32
        p_stored = p_mat.astype(self._pattern_dtype)
        # ||p_i||^2 from the *stored* values (consistent with the kernel dots).
        p_sq = jnp.sum(p_stored.astype(jnp.float32) ** 2, axis=1)             # (n,)

        # Transposed, padded bank: (D_pad, N_pad). Padded rows/cols are exact zeros.
        bank = jnp.zeros((d_pad, n_pad), self._pattern_dtype).at[:d, :n].set(p_stored.T)
        psq = jnp.zeros((1, n_pad), jnp.float32).at[0, :n].set(p_sq)

        self._bank = dict(bank=bank, psq=psq, n=n, d=d, d_pad=d_pad,
                          tile_d=tile_d, tile_n=tile_n, vmem_limit=vmem_limit)
        return self._bank

    # ---- forward -------------------------------------------------------------
    def forward(self, x):
        if not self.patterns:
            raise ValueError("Net has no stored patterns")
        x = jnp.asarray(x, dtype=jnp.float32)
        d = int(x.size)

        bank = self._bank
        if bank is None or bank["d"] != d:
            bank = self._build_bank(d)

        _, avg, idx = _retrieve(
            x.reshape(1, d), bank["bank"], bank["psq"],
            n=bank["n"], d_pad=bank["d_pad"],
            tile_d=bank["tile_d"], tile_n=bank["tile_n"],
            vmem_limit=bank["vmem_limit"])

        idx_host, avg_host = jax.device_get((idx, avg))   # single host sync per query
        # Original code: st.write(f'CLASS SIMILARITY AVERAGE: ...')
        print(f"CLASS SIMILARITY AVERAGE: {float(avg_host):.6f}")
        return self.patterns[int(idx_host)]

    __call__ = forward


if __name__ == "__main__":
    key = jax.random.PRNGKey(0)

    # Small shapes consistent with the module: x is an NCHW image tensor.
    B, C, H, W = 2, 4, 16, 16
    N_PATTERNS = 4

    k_x, k_p = jax.random.split(key)
    x = jax.random.normal(k_x, (B, C, H, W), dtype=jnp.float32)

    net = Net()                                    # bf16 bank by default
    p_keys = jax.random.split(k_p, N_PATTERNS)
    for i in range(N_PATTERNS):
        pattern = jax.random.normal(p_keys[i], (B, C, H, W), dtype=jnp.float32)
        net.add(pattern, key_class=i)
    # Make one pattern highly similar to x so retrieval is well-defined.
    net.patterns[2] = 0.9 * x + 0.01 * net.patterns[2]
    net._bank = None   # patterns mutated directly -> invalidate cache

    out = net(x)
    out = jax.block_until_ready(out)

    # ---- reference (pure JAX, f32) -------------------------------------------
    d = x.size
    p_mat = jnp.stack([p.reshape(d) for p in net.patterns], axis=0)
    xv = x.reshape(d)
    ref_sims = (p_mat @ xv) / jnp.maximum(
        jnp.linalg.norm(xv) * jnp.linalg.norm(p_mat, axis=1), _EPS)
    ref_idx = int(jnp.argmax(ref_sims))
    assert jnp.array_equal(out, net.patterns[ref_idx]), "wrong pattern returned"

    # ---- bf16 bank similarities through the production path (loose tolerance) --
    bank = net._bank
    sims, _, kidx = _retrieve(xv.reshape(1, d), bank["bank"], bank["psq"],
                              n=bank["n"], d_pad=bank["d_pad"],
                              tile_d=bank["tile_d"], tile_n=bank["tile_n"],
                              vmem_limit=bank["vmem_limit"])
    sims = jax.block_until_ready(sims)
    assert int(kidx) == ref_idx, "argmax mismatch (bf16 bank)"
    assert jnp.allclose(sims, ref_sims, atol=5e-3), "similarity mismatch (bf16 bank)"

    # ---- multi-tile grid check (f32 bank, grid = (2 N-tiles, 4 D-tiles)) ------
    Dt, Nt = 1024, 256
    kq, kb = jax.random.split(jax.random.PRNGKey(1))
    q = jax.random.normal(kq, (1, Dt), dtype=jnp.float32)
    bank_f32 = jax.random.normal(kb, (Dt, Nt), dtype=jnp.float32)
    psq_f32 = jnp.sum(bank_f32 * bank_f32, axis=0, keepdims=True)       # (1, Nt)
    _, vlimit = _vmem_plan()
    sims2 = _pallas_cosine_sims(q, bank_f32, psq_f32, tile_d=256, tile_n=128,
                                vmem_limit=vlimit)
    sims2 = jax.block_until_ready(sims2)
    ref2 = (jnp.matmul(q[0], bank_f32, precision=jax.lax.Precision.HIGHEST)
            / jnp.maximum(jnp.linalg.norm(q) * jnp.linalg.norm(bank_f32, axis=0), _EPS))
    assert jnp.allclose(sims2, ref2, atol=1e-4), "multi-tile similarity mismatch"

    print("KERNEL_OK")
</pallas_src>

<mosaic_0001>
module attributes {stable_mosaic.version = 11 : i64} {
  func.func @_cosine_sim_kernel(%arg0: i32, %arg1: i32, %arg2: memref<1x2048xf32, #tpu.memory_space<vmem>>, %arg3: memref<2048x8xbf16, #tpu.memory_space<vmem>>, %arg4: memref<1x8xf32, #tpu.memory_space<vmem>>, %arg5: memref<1x8xf32, #tpu.memory_space<vmem>>, %arg6: memref<1x8xf32, #tpu.memory_space<vmem>>, %arg7: memref<1x1xf32, #tpu.memory_space<vmem>>) attributes {dimension_semantics = [#tpu.dimension_semantics<parallel>, #tpu.dimension_semantics<arbitrary>], iteration_bounds = array<i64: 1, 1>, scalar_prefetch = 0 : i64, scratch_operands = 2 : i64, tpu.core_type = #tpu.core_type<tc>, window_params = [{transform_indices = @transform_0, window_bounds = array<i64: 1, 2048>}, {transform_indices = @transform_1, window_bounds = array<i64: 2048, 8>}, {transform_indices = @transform_2, window_bounds = array<i64: 1, 8>}, {transform_indices = @transform_3, window_bounds = array<i64: 1, 8>}]} {
    %c0_i32 = arith.constant 0 : i32
    %0 = arith.cmpi eq, %arg1, %c0_i32 : i32
    %1 = arith.extui %0 : i1 to i32
    %c0_i32_0 = arith.constant 0 : i32
    %2 = arith.cmpi ne, %1, %c0_i32_0 : i32
    scf.if %2 {
      %cst_15 = arith.constant 0.000000e+00 : f32
      %22 = vector.broadcast %cst_15 : f32 to vector<1x8xf32>
      %c0_16 = arith.constant 0 : index
      %c0_17 = arith.constant 0 : index
      %23 = vector.load %arg6[%c0_16, %c0_17] : memref<1x8xf32, #tpu.memory_space<vmem>>, vector<1x8xf32>
      tpu.vector_store %arg6[%c0_16, %c0_17], %22 {strides = array<i32>} : memref<1x8xf32, #tpu.memory_space<vmem>>, vector<1x8xf32>,
      %cst_18 = arith.constant 0.000000e+00 : f32
      %24 = vector.broadcast %cst_18 : f32 to vector<1x1xf32>
      %c0_19 = arith.constant 0 : index
      %c0_20 = arith.constant 0 : index
      %25 = vector.load %arg7[%c0_19, %c0_20] : memref<1x1xf32, #tpu.memory_space<vmem>>, vector<1x1xf32>
      tpu.vector_store %arg7[%c0_19, %c0_20], %24 {strides = array<i32>} : memref<1x1xf32, #tpu.memory_space<vmem>>, vector<1x1xf32>,
    } else {
    }
    %c0 = arith.constant 0 : index
    %c0_1 = arith.constant 0 : index
    %3 = vector.load %arg2[%c0, %c0_1] : memref<1x2048xf32, #tpu.memory_space<vmem>>, vector<1x2048xf32>
    %c0_2 = arith.constant 0 : index
    %c0_3 = arith.constant 0 : index
    %4 = vector.load %arg3[%c0_2, %c0_3] : memref<2048x8xbf16, #tpu.memory_space<vmem>>, vector<2048x8xbf16>
    %c0_4 = arith.constant 0 : index
    %c0_5 = arith.constant 0 : index
    %5 = vector.load %arg6[%c0_4, %c0_5] : memref<1x8xf32, #tpu.memory_space<vmem>>, vector<1x8xf32>
    %6 = arith.truncf %3 : vector<1x2048xf32> to vector<1x2048xbf16>
    %cst = arith.constant dense<0.000000e+00> : vector<1x8xf32>
    %7 = tpu.matmul %6, %4, %cst {dimension_numbers = #tpu.dot_dimension_numbers<[1], [0], [0], [1], [0, 0, 1, 1], [], []>} : vector<1x2048xbf16>, vector<2048x8xbf16>, vector<1x8xf32> -> vector<1x8xf32>
    %8 = arith.addf %5, %7 : vector<1x8xf32>
    %c0_6 = arith.constant 0 : index
    %c0_7 = arith.constant 0 : index
    %9 = vector.load %arg6[%c0_6, %c0_7] : memref<1x8xf32, #tpu.memory_space<vmem>>, vector<1x8xf32>
    tpu.vector_store %arg6[%c0_6, %c0_7], %8 {strides = array<i32>} : memref<1x8xf32, #tpu.memory_space<vmem>>, vector<1x8xf32>,
    %c0_8 = arith.constant 0 : index
    %c0_9 = arith.constant 0 : index
    %10 = vector.load %arg7[%c0_8, %c0_9] : memref<1x1xf32, #tpu.memory_space<vmem>>, vector<1x1xf32>
    %11 = arith.mulf %3, %3 : vector<1x2048xf32>
    %12 = vector.shape_cast %11 : vector<1x2048xf32> to vector<1x1x2048xf32>
    %cst_10 = arith.constant dense<0.000000e+00> : vector<1xf32>
    %13 = vector.multi_reduction <add>, %12, %cst_10 [1, 2] : vector<1x1x2048xf32> to vector<1xf32>
    %14 = vector.shape_cast %13 : vector<1xf32> to vector<1x1x1xf32>
    %15 = vector.extract %14[0, 0, 0] : f32 from vector<1x1x1xf32>
    %16 = vector.broadcast %15 : f32 to vector<1x1xf32>
    %17 = arith.addf %10, %16 : vector<1x1xf32>
    %c0_11 = arith.constant 0 : index
    %c0_12 = arith.constant 0 : index
    %18 = vector.load %arg7[%c0_11, %c0_12] : memref<1x1xf32, #tpu.memory_space<vmem>>, vector<1x1xf32>
    tpu.vector_store %arg7[%c0_11, %c0_12], %17 {strides = array<i32>} : memref<1x1xf32, #tpu.memory_space<vmem>>, vector<1x1xf32>,
    %c0_i32_13 = arith.constant 0 : i32
    %19 = arith.cmpi eq, %arg1, %c0_i32_13 : i32
    %20 = arith.extui %19 : i1 to i32
    %c0_i32_14 = arith.constant 0 : i32
    %21 = arith.cmpi ne, %20, %c0_i32_14 : i32
    scf.if %21 {
      %c0_15 = arith.constant 0 : index
      %c0_16 = arith.constant 0 : index
      %22 = vector.load %arg7[%c0_15, %c0_16] : memref<1x1xf32, #tpu.memory_space<vmem>>, vector<1x1xf32>
      %c0_17 = arith.constant 0 : index
      %c0_18 = arith.constant 0 : index
      %23 = vector.load %arg4[%c0_17, %c0_18] : memref<1x8xf32, #tpu.memory_space<vmem>>, vector<1x8xf32>
      %24 = vector.broadcast %22 : vector<1x1xf32> to vector<1x8xf32>
      %25 = arith.mulf %24, %23 : vector<1x8xf32>
      %cst_19 = arith.constant 1.000000e-16 : f32
      %26 = vector.broadcast %cst_19 : f32 to vector<1x8xf32>
      %27 = arith.maximumf %25, %26 : vector<1x8xf32>
      %c0_20 = arith.constant 0 : index
      %c0_21 = arith.constant 0 : index
      %28 = vector.load %arg6[%c0_20, %c0_21] : memref<1x8xf32, #tpu.memory_space<vmem>>, vector<1x8xf32>
      %29 = math.rsqrt %27 : vector<1x8xf32>
      %30 = arith.mulf %28, %29 : vector<1x8xf32>
      %c0_22 = arith.constant 0 : index
      %c0_23 = arith.constant 0 : index
      %31 = vector.load %arg5[%c0_22, %c0_23] : memref<1x8xf32, #tpu.memory_space<vmem>>, vector<1x8xf32>
      tpu.vector_store %arg5[%c0_22, %c0_23], %30 {strides = array<i32>} : memref<1x8xf32, #tpu.memory_space<vmem>>, vector<1x8xf32>,
    } else {
    }
    return
  }
  func.func @transform_0(%arg0: i32, %arg1: i32) -> (i32, i32) {
    %c0_i32 = arith.constant 0 : i32
    %c0_i32_0 = arith.constant 0 : i32
    return %c0_i32, %arg1 : i32, i32
  }
  func.func @transform_1(%arg0: i32, %arg1: i32) -> (i32, i32) {
    %c0_i32 = arith.constant 0 : i32
    return %arg1, %arg0 : i32, i32
  }
  func.func @transform_2(%arg0: i32, %arg1: i32) -> (i32, i32) {
    %c0_i32 = arith.constant 0 : i32
    %c0_i32_0 = arith.constant 0 : i32
    return %c0_i32, %arg0 : i32, i32
  }
  func.func @transform_3(%arg0: i32, %arg1: i32) -> (i32, i32) {
    %c0_i32 = arith.constant 0 : i32
    %c0_i32_0 = arith.constant 0 : i32
    return %c0_i32, %arg0 : i32, i32
  }
}

</mosaic_0001>

<llo_original>
// kernel: _retrieve.1
$region0: #{_retrieve.1}
  #allocation0 [shape = 'u32[]', space=smem, size = 0x4, offset = 0x4, fixed_abs, tag = 'smem constant byte address 0x4 - core index']
  #allocation1 [shape = 'u32[144,128]{1,0:T(1,128)}', space=vmem, size = 0x12000, scoped, tag = 'internal scratch']
  #allocation2 [shape = 'f32[1,8]{1,0:T(1,128)}', space=vmem, size = 0x200, scoped, tag = 'scratch operand']
  #allocation3 [shape = 'f32[1,1]{1,0:T(1,128)}', space=vmem, size = 0x200, scoped, tag = 'scratch operand']
  %s0 = inlined_call_operand.vmem [shape: f32[1,2048], index: 0, kind: input, shape index: {}]
  %s1 = inlined_call_operand.vmem [shape: bf16[2048,8], index: 1, kind: input, shape index: {}]
  %s2 = inlined_call_operand.vmem [shape: f32[1,8], index: 2, kind: input, shape index: {}]
  %s3 = inlined_call_operand.vmem [shape: f32[1,8], index: 3, kind: output, shape index: {}]
  %s4 = sld [smem:[#allocation0]]
  $region30: #{_retrieve.1} parent=0
    _
  %s6 = ssub.s32 1, %s4
  %s7 = scalar_select 0, %s6, %s4
  // Predicated region
  $region2: #{_retrieve.1} parent=0 // pred_check
    _
  $region3: #{_retrieve.1} parent=0 // pred_check_branch
    %9 = sbr.rel (0) target = $region5
  $region4: #{_retrieve.1} parent=0 // pred_region
    _
  $region5: #{_retrieve.1} parent=0 // pred_fallthru
    _
  // Predicated region
  $region6: #{_retrieve.1} parent=0 // pred_check
    _
  $region7: #{_retrieve.1} parent=0 // pred_check_branch
    %11 = sbr.rel (0) target = $region9
  $region8: #{_retrieve.1} parent=0 // pred_region
    _
  $region9: #{_retrieve.1} parent=0 // pred_fallthru
    _
  // Predicated region
  $region10: #{_retrieve.1} parent=0 // pred_check
    _
  $region11: #{_retrieve.1} parent=0 // pred_check_branch
    %13 = sbr.rel (0) target = $region13
  $region12: #{_retrieve.1} parent=0 // pred_region
    _
  $region13: #{_retrieve.1} parent=0 // pred_fallthru
    _
  %p15 = scmp.eq.s32.totalorder 0, 0
  // Predicated region
  $region14: #{_retrieve.1} parent=0 // pred_check
    %p16 = pneg %p15
  $region15: #{_retrieve.1} parent=0 // pred_check_branch
    %18 = sbr.rel (%p16) target = $region17
  $region16: #{_retrieve.1} parent=0 // pred_region
    %vm19 = vcmask 57344
    %20 = vst.msk [vmem:[#allocation2] sm:$0x1] %vm19, 0.0
    %vm21 = vcmask 0
    %22 = vst.msk [vmem:[#allocation3] sm:$0x1] %vm21, 0.0
  $region17: #{_retrieve.1} parent=0 // pred_fallthru
    _
  %v23 = vld [vmem:[%s0] sm:$0xff]
  %v24 = vld [vmem:[%s0 + $0x8] sm:$0xff]
  %v25 = vld [vmem:[%s1] sm:$0xf]
  %v26 = vld [vmem:[%s1 + $0x4] sm:$0xf]
  %v27 = vld [vmem:[%s1 + $0x8] sm:$0xf]
  %v28 = vld [vmem:[%s1 + $0xc] sm:$0xf]
  %v29 = vld [vmem:[%s1 + $0x10] sm:$0xf]
  %v30 = vld [vmem:[%s1 + $0x14] sm:$0xf]
  %v31 = vld [vmem:[%s1 + $0x18] sm:$0xf]
  %v32 = vld [vmem:[%s1 + $0x1c] sm:$0xf]
  %v33 = vld [vmem:[%s1 + $0x20] sm:$0xf]
  %v34 = vld [vmem:[%s1 + $0x24] sm:$0xf]
  %v35 = vld [vmem:[%s1 + $0x28] sm:$0xf]
  %v36 = vld [vmem:[%s1 + $0x2c] sm:$0xf]
  %v37 = vld [vmem:[%s1 + $0x30] sm:$0xf]
  %v38 = vld [vmem:[%s1 + $0x34] sm:$0xf]
  %v39 = vld [vmem:[%s1 + $0x38] sm:$0xf]
  %v40 = vld [vmem:[%s1 + $0x3c] sm:$0xf]
  %v41 = vld [vmem:[%s1 + $0x40] sm:$0xf]
  %v42 = vld [vmem:[%s1 + $0x44] sm:$0xf]
  %v43 = vld [vmem:[%s1 + $0x48] sm:$0xf]
  %v44 = vld [vmem:[%s1 + $0x4c] sm:$0xf]
  %v45 = vld [vmem:[%s1 + $0x50] sm:$0xf]
  %v46 = vld [vmem:[%s1 + $0x54] sm:$0xf]
  %v47 = vld [vmem:[%s1 + $0x58] sm:$0xf]
  %v48 = vld [vmem:[%s1 + $0x5c] sm:$0xf]
  %v49 = vld [vmem:[%s1 + $0x60] sm:$0xf]
  %v50 = vld [vmem:[%s1 + $0x64] sm:$0xf]
  %v51 = vld [vmem:[%s1 + $0x68] sm:$0xf]
  %v52 = vld [vmem:[%s1 + $0x6c] sm:$0xf]
  %v53 = vld [vmem:[%s1 + $0x70] sm:$0xf]
  %v54 = vld [vmem:[%s1 + $0x74] sm:$0xf]
  %v55 = vld [vmem:[%s1 + $0x78] sm:$0xf]
  %v56 = vld [vmem:[%s1 + $0x7c] sm:$0xf]
  %v57 = vld [vmem:[%s1 + $0x80] sm:$0xf]
  %v58 = vld [vmem:[%s1 + $0x84] sm:$0xf]
  %v59 = vld [vmem:[%s1 + $0x88] sm:$0xf]
  %v60 = vld [vmem:[%s1 + $0x8c] sm:$0xf]
  %v61 = vld [vmem:[%s1 + $0x90] sm:$0xf]
  %v62 = vld [vmem:[%s1 + $0x94] sm:$0xf]
  %v63 = vld [vmem:[%s1 + $0x98] sm:$0xf]
  %v64 = vld [vmem:[%s1 + $0x9c] sm:$0xf]
  %v65 = vld [vmem:[%s1 + $0xa0] sm:$0xf]
  %v66 = vld [vmem:[%s1 + $0xa4] sm:$0xf]
  %v67 = vld [vmem:[%s1 + $0xa8] sm:$0xf]
  %v68 = vld [vmem:[%s1 + $0xac] sm:$0xf]
  %v69 = vld [vmem:[%s1 + $0xb0] sm:$0xf]
  %v70 = vld [vmem:[%s1 + $0xb4] sm:$0xf]
  %v71 = vld [vmem:[%s1 + $0xb8] sm:$0xf]
  %v72 = vld [vmem:[%s1 + $0xbc] sm:$0xf]
  %v73 = vld [vmem:[%s1 + $0xc0] sm:$0xf]
  %v74 = vld [vmem:[%s1 + $0xc4] sm:$0xf]
  %v75 = vld [vmem:[%s1 + $0xc8] sm:$0xf]
  %v76 = vld [vmem:[%s1 + $0xcc] sm:$0xf]
  %v77 = vld [vmem:[%s1 + $0xd0] sm:$0xf]
  %v78 = vld [vmem:[%s1 + $0xd4] sm:$0xf]
  %v79 = vld [vmem:[%s1 + $0xd8] sm:$0xf]
  %v80 = vld [vmem:[%s1 + $0xdc] sm:$0xf]
  %v81 = vld [vmem:[%s1 + $0xe0] sm:$0xf]
  %v82 = vld [vmem:[%s1 + $0xe4] sm:$0xf]
  %v83 = vld [vmem:[%s1 + $0xe8] sm:$0xf]
  %v84 = vld [vmem:[%s1 + $0xec] sm:$0xf]
  %v85 = vld [vmem:[%s1 + $0xf0] sm:$0xf]
  %v86 = vld [vmem:[%s1 + $0xf4] sm:$0xf]
  %v87 = vld [vmem:[%s1 + $0xf8] sm:$0xf]
  %v88 = vld [vmem:[%s1 + $0xfc] sm:$0xf]
  %v89 = vld [vmem:[%s1 + $0x100] sm:$0xf]
  %v90 = vld [vmem:[%s1 + $0x104] sm:$0xf]
  %v91 = vld [vmem:[%s1 + $0x108] sm:$0xf]
  %v92 = vld [vmem:[%s1 + $0x10c] sm:$0xf]
  %v93 = vld [vmem:[%s1 + $0x110] sm:$0xf]
  %v94 = vld [vmem:[%s1 + $0x114] sm:$0xf]
  %v95 = vld [vmem:[%s1 + $0x118] sm:$0xf]
  %v96 = vld [vmem:[%s1 + $0x11c] sm:$0xf]
  %v97 = vld [vmem:[%s1 + $0x120] sm:$0xf]
  %v98 = vld [vmem:[%s1 + $0x124] sm:$0xf]
  %v99 = vld [vmem:[%s1 + $0x128] sm:$0xf]
  %v100 = vld [vmem:[%s1 + $0x12c] sm:$0xf]
  %v101 = vld [vmem:[%s1 + $0x130] sm:$0xf]
  %v102 = vld [vmem:[%s1 + $0x134] sm:$0xf]
  %v103 = vld [vmem:[%s1 + $0x138] sm:$0xf]
  %v104 = vld [vmem:[%s1 + $0x13c] sm:$0xf]
  %v105 = vld [vmem:[%s1 + $0x140] sm:$0xf]
  %v106 = vld [vmem:[%s1 + $0x144] sm:$0xf]
  %v107 = vld [vmem:[%s1 + $0x148] sm:$0xf]
  %v108 = vld [vmem:[%s1 + $0x14c] sm:$0xf]
  %v109 = vld [vmem:[%s1 + $0x150] sm:$0xf]
  %v110 = vld [vmem:[%s1 + $0x154] sm:$0xf]
  %v111 = vld [vmem:[%s1 + $0x158] sm:$0xf]
  %v112 = vld [vmem:[%s1 + $0x15c] sm:$0xf]
  %v113 = vld [vmem:[%s1 + $0x160] sm:$0xf]
  %v114 = vld [vmem:[%s1 + $0x164] sm:$0xf]
  %v115 = vld [vmem:[%s1 + $0x168] sm:$0xf]
  %v116 = vld [vmem:[%s1 + $0x16c] sm:$0xf]
  %v117 = vld [vmem:[%s1 + $0x170] sm:$0xf]
  %v118 = vld [vmem:[%s1 + $0x174] sm:$0xf]
  %v119 = vld [vmem:[%s1 + $0x178] sm:$0xf]
  %v120 = vld [vmem:[%s1 + $0x17c] sm:$0xf]
  %v121 = vld [vmem:[%s1 + $0x180] sm:$0xf]
  %v122 = vld [vmem:[%s1 + $0x184] sm:$0xf]
  %v123 = vld [vmem:[%s1 + $0x188] sm:$0xf]
  %v124 = vld [vmem:[%s1 + $0x18c] sm:$0xf]
  %v125 = vld [vmem:[%s1 + $0x190] sm:$0xf]
  %v126 = vld [vmem:[%s1 + $0x194] sm:$0xf]
  %v127 = vld [vmem:[%s1 + $0x198] sm:$0xf]
  %v128 = vld [vmem:[%s1 + $0x19c] sm:$0xf]
  %v129 = vld [vmem:[%s1 + $0x1a0] sm:$0xf]
  %v130 = vld [vmem:[%s1 + $0x1a4] sm:$0xf]
  %v131 = vld [vmem:[%s1 + $0x1a8] sm:$0xf]
  %v132 = vld [vmem:[%s1 + $0x1ac] sm:$0xf]
  %v133 = vld [vmem:[%s1 + $0x1b0] sm:$0xf]
  %v134 = vld [vmem:[%s1 + $0x1b4] sm:$0xf]
  %v135 = vld [vmem:[%s1 + $0x1b8] sm:$0xf]
  %v136 = vld [vmem:[%s1 + $0x1bc] sm:$0xf]
  %v137 = vld [vmem:[%s1 + $0x1c0] sm:$0xf]
  %v138 = vld [vmem:[%s1 + $0x1c4] sm:$0xf]
  %v139 = vld [vmem:[%s1 + $0x1c8] sm:$0xf]
  %v140 = vld [vmem:[%s1 + $0x1cc] sm:$0xf]
  %v141 = vld [vmem:[%s1 + $0x1d0] sm:$0xf]
  %v142 = vld [vmem:[%s1 + $0x1d4] sm:$0xf]
  %v143 = vld [vmem:[%s1 + $0x1d8] sm:$0xf]
  %v144 = vld [vmem:[%s1 + $0x1dc] sm:$0xf]
  %v145 = vld [vmem:[%s1 + $0x1e0] sm:$0xf]
  %v146 = vld [vmem:[%s1 + $0x1e4] sm:$0xf]
  %v147 = vld [vmem:[%s1 + $0x1e8] sm:$0xf]
  %v148 = vld [vmem:[%s1 + $0x1ec] sm:$0xf]
  %v149 = vld [vmem:[%s1 + $0x1f0] sm:$0xf]
  %v150 = vld [vmem:[%s1 + $0x1f4] sm:$0xf]
  %v151 = vld [vmem:[%s1 + $0x1f8] sm:$0xf]
  %v152 = vld [vmem:[%s1 + $0x1fc] sm:$0xf]
  %v153 = vld [vmem:[%s1 + $0x200] sm:$0xf]
  %v154 = vld [vmem:[%s1 + $0x204] sm:$0xf]
  %v155 = vld [vmem:[%s1 + $0x208] sm:$0xf]
  %v156 = vld [vmem:[%s1 + $0x20c] sm:$0xf]
  %v157 = vld [vmem:[%s1 + $0x210] sm:$0xf]
  %v158 = vld [vmem:[%s1 + $0x214] sm:$0xf]
  %v159 = vld [vmem:[%s1 + $0x218] sm:$0xf]
  %v160 = vld [vmem:[%s1 + $0x21c] sm:$0xf]
  %v161 = vld [vmem:[%s1 + $0x220] sm:$0xf]
  %v162 = vld [vmem:[%s1 + $0x224] sm:$0xf]
  %v163 = vld [vmem:[%s1 + $0x228] sm:$0xf]
  %v164 = vld [vmem:[%s1 + $0x22c] sm:$0xf]
  %v165 = vld [vmem:[%s1 + $0x230] sm:$0xf]
  %v166 = vld [vmem:[%s1 + $0x234] sm:$0xf]
  %v167 = vld [vmem:[%s1 + $0x238] sm:$0xf]
  %v168 = vld [vmem:[%s1 + $0x23c] sm:$0xf]
  %v169 = vld [vmem:[%s1 + $0x240] sm:$0xf]
  %v170 = vld [vmem:[%s1 + $0x244] sm:$0xf]
  %v171 = vld [vmem:[%s1 + $0x248] sm:$0xf]
  %v172 = vld [vmem:[%s1 + $0x24c] sm:$0xf]
  %v173 = vld [vmem:[%s1 + $0x250] sm:$0xf]
  %v174 = vld [vmem:[%s1 + $0x254] sm:$0xf]
  %v175 = vld [vmem:[%s1 + $0x258] sm:$0xf]
  %v176 = vld [vmem:[%s1 + $0x25c] sm:$0xf]
  %v177 = vld [vmem:[%s1 + $0x260] sm:$0xf]
  %v178 = vld [vmem:[%s1 + $0x264] sm:$0xf]
  %v179 = vld [vmem:[%s1 + $0x268] sm:$0xf]
  %v180 = vld [vmem:[%s1 + $0x26c] sm:$0xf]
  %v181 = vld [vmem:[%s1 + $0x270] sm:$0xf]
  %v182 = vld [vmem:[%s1 + $0x274] sm:$0xf]
  %v183 = vld [vmem:[%s1 + $0x278] sm:$0xf]
  %v184 = vld [vmem:[%s1 + $0x27c] sm:$0xf]
  %v185 = vld [vmem:[%s1 + $0x280] sm:$0xf]
  %v186 = vld [vmem:[%s1 + $0x284] sm:$0xf]
  %v187 = vld [vmem:[%s1 + $0x288] sm:$0xf]
  %v188 = vld [vmem:[%s1 + $0x28c] sm:$0xf]
  %v189 = vld [vmem:[%s1 + $0x290] sm:$0xf]
  %v190 = vld [vmem:[%s1 + $0x294] sm:$0xf]
  %v191 = vld [vmem:[%s1 + $0x298] sm:$0xf]
  %v192 = vld [vmem:[%s1 + $0x29c] sm:$0xf]
  %v193 = vld [vmem:[%s1 + $0x2a0] sm:$0xf]
  %v194 = vld [vmem:[%s1 + $0x2a4] sm:$0xf]
  %v195 = vld [vmem:[%s1 + $0x2a8] sm:$0xf]
  %v196 = vld [vmem:[%s1 + $0x2ac] sm:$0xf]
  %v197 = vld [vmem:[%s1 + $0x2b0] sm:$0xf]
  %v198 = vld [vmem:[%s1 + $0x2b4] sm:$0xf]
  %v199 = vld [vmem:[%s1 + $0x2b8] sm:$0xf]
  %v200 = vld [vmem:[%s1 + $0x2bc] sm:$0xf]
  %v201 = vld [vmem:[%s1 + $0x2c0] sm:$0xf]
  %v202 = vld [vmem:[%s1 + $0x2c4] sm:$0xf]
  %v203 = vld [vmem:[%s1 + $0x2c8] sm:$0xf]
  %v204 = vld [vmem:[%s1 + $0x2cc] sm:$0xf]
  %v205 = vld [vmem:[%s1 + $0x2d0] sm:$0xf]
  %v206 = vld [vmem:[%s1 + $0x2d4] sm:$0xf]
  %v207 = vld [vmem:[%s1 + $0x2d8] sm:$0xf]
  %v208 = vld [vmem:[%s1 + $0x2dc] sm:$0xf]
  %v209 = vld [vmem:[%s1 + $0x2e0] sm:$0xf]
  %v210 = vld [vmem:[%s1 + $0x2e4] sm:$0xf]
  %v211 = vld [vmem:[%s1 + $0x2e8] sm:$0xf]
  %v212 = vld [vmem:[%s1 + $0x2ec] sm:$0xf]
  %v213 = vld [vmem:[%s1 + $0x2f0] sm:$0xf]
  %v214 = vld [vmem:[%s1 + $0x2f4] sm:$0xf]
  %v215 = vld [vmem:[%s1 + $0x2f8] sm:$0xf]
  %v216 = vld [vmem:[%s1 + $0x2fc] sm:$0xf]
  %v217 = vld [vmem:[%s1 + $0x300] sm:$0xf]
  %v218 = vld [vmem:[%s1 + $0x304] sm:$0xf]
  %v219 = vld [vmem:[%s1 + $0x308] sm:$0xf]
  %v220 = vld [vmem:[%s1 + $0x30c] sm:$0xf]
  %v221 = vld [vmem:[%s1 + $0x310] sm:$0xf]
  %v222 = vld [vmem:[%s1 + $0x314] sm:$0xf]
  %v223 = vld [vmem:[%s1 + $0x318] sm:$0xf]
  %v224 = vld [vmem:[%s1 + $0x31c] sm:$0xf]
  %v225 = vld [vmem:[%s1 + $0x320] sm:$0xf]
  %v226 = vld [vmem:[%s1 + $0x324] sm:$0xf]
  %v227 = vld [vmem:[%s1 + $0x328] sm:$0xf]
  %v228 = vld [vmem:[%s1 + $0x32c] sm:$0xf]
  %v229 = vld [vmem:[%s1 + $0x330] sm:$0xf]
  %v230 = vld [vmem:[%s1 + $0x334] sm:$0xf]
  %v231 = vld [vmem:[%s1 + $0x338] sm:$0xf]
  %v232 = vld [vmem:[%s1 + $0x33c] sm:$0xf]
  %v233 = vld [vmem:[%s1 + $0x340] sm:$0xf]
  %v234 = vld [vmem:[%s1 + $0x344] sm:$0xf]
  %v235 = vld [vmem:[%s1 + $0x348] sm:$0xf]
  %v236 = vld [vmem:[%s1 + $0x34c] sm:$0xf]
  %v237 = vld [vmem:[%s1 + $0x350] sm:$0xf]
  %v238 = vld [vmem:[%s1 + $0x354] sm:$0xf]
  %v239 = vld [vmem:[%s1 + $0x358] sm:$0xf]
  %v240 = vld [vmem:[%s1 + $0x35c] sm:$0xf]
  %v241 = vld [vmem:[%s1 + $0x360] sm:$0xf]
  %v242 = vld [vmem:[%s1 + $0x364] sm:$0xf]
  %v243 = vld [vmem:[%s1 + $0x368] sm:$0xf]
  %v244 = vld [vmem:[%s1 + $0x36c] sm:$0xf]
  %v245 = vld [vmem:[%s1 + $0x370] sm:$0xf]
  %v246 = vld [vmem:[%s1 + $0x374] sm:$0xf]
  %v247 = vld [vmem:[%s1 + $0x378] sm:$0xf]
  %v248 = vld [vmem:[%s1 + $0x37c] sm:$0xf]
  %v249 = vld [vmem:[%s1 + $0x380] sm:$0xf]
  %v250 = vld [vmem:[%s1 + $0x384] sm:$0xf]
  %v251 = vld [vmem:[%s1 + $0x388] sm:$0xf]
  %v252 = vld [vmem:[%s1 + $0x38c] sm:$0xf]
  %v253 = vld [vmem:[%s1 + $0x390] sm:$0xf]
  %v254 = vld [vmem:[%s1 + $0x394] sm:$0xf]
  %v255 = vld [vmem:[%s1 + $0x398] sm:$0xf]
  %v256 = vld [vmem:[%s1 + $0x39c] sm:$0xf]
  %v257 = vld [vmem:[%s1 + $0x3a0] sm:$0xf]
  %v258 = vld [vmem:[%s1 + $0x3a4] sm:$0xf]
  %v259 = vld [vmem:[%s1 + $0x3a8] sm:$0xf]
  %v260 = vld [vmem:[%s1 + $0x3ac] sm:$0xf]
  %v261 = vld [vmem:[%s1 + $0x3b0] sm:$0xf]
  %v262 = vld [vmem:[%s1 + $0x3b4] sm:$0xf]
  %v263 = vld [vmem:[%s1 + $0x3b8] sm:$0xf]
  %v264 = vld [vmem:[%s1 + $0x3bc] sm:$0xf]
  %v265 = vld [vmem:[%s1 + $0x3c0] sm:$0xf]
  %v266 = vld [vmem:[%s1 + $0x3c4] sm:$0xf]
  %v267 = vld [vmem:[%s1 + $0x3c8] sm:$0xf]
  %v268 = vld [vmem:[%s1 + $0x3cc] sm:$0xf]
  %v269 = vld [vmem:[%s1 + $0x3d0] sm:$0xf]
  %v270 = vld [vmem:[%s1 + $0x3d4] sm:$0xf]
  %v271 = vld [vmem:[%s1 + $0x3d8] sm:$0xf]
  %v272 = vld [vmem:[%s1 + $0x3dc] sm:$0xf]
  %v273 = vld [vmem:[%s1 + $0x3e0] sm:$0xf]
  %v274 = vld [vmem:[%s1 + $0x3e4] sm:$0xf]
  %v275 = vld [vmem:[%s1 + $0x3e8] sm:$0xf]
  %v276 = vld [vmem:[%s1 + $0x3ec] sm:$0xf]
  %v277 = vld [vmem:[%s1 + $0x3f0] sm:$0xf]
  %v278 = vld [vmem:[%s1 + $0x3f4] sm:$0xf]
  %v279 = vld [vmem:[%s1 + $0x3f8] sm:$0xf]
  %v280 = vld [vmem:[%s1 + $0x3fc] sm:$0xf]
  %v281 = vld [vmem:[#allocation2] sm:$0x1]
  %v284 = vlaneseq
  %v285 = vshrl.u32 %v284, 7
  %v286 = vsub.s32 0, %v285
  %v287 = vrot.slane %v23, %v286
  %v288 = vlaneseq
  %v289 = vshrl.u32 %v288, 7
  %v290 = vsub.s32 1, %v289
  %v291 = vrot.slane %v23, %v290
  %v292 = vlaneseq
  %v293 = vshrl.u32 %v292, 7
  %v294 = vsub.s32 2, %v293
  %v295 = vrot.slane %v23, %v294
  %v296 = vlaneseq
  %v297 = vshrl.u32 %v296, 7
  %v298 = vsub.s32 3, %v297
  %v299 = vrot.slane %v23, %v298
  %v300 = vlaneseq
  %v301 = vshrl.u32 %v300, 7
  %v302 = vsub.s32 4, %v301
  %v303 = vrot.slane %v23, %v302
  %v304 = vlaneseq
  %v305 = vshrl.u32 %v304, 7
  %v306 = vsub.s32 5, %v305
  %v307 = vrot.slane %v23, %v306
  %v308 = vlaneseq
  %v309 = vshrl.u32 %v308, 7
  %v310 = vsub.s32 6, %v309
  %v311 = vrot.slane %v23, %v310
  %v312 = vlaneseq
  %v313 = vshrl.u32 %v312, 7
  %v314 = vsub.s32 7, %v313
  %v315 = vrot.slane %v23, %v314
  %v316 = vlaneseq
  %v317 = vshrl.u32 %v316, 7
  %v318 = vsub.s32 0, %v317
  %v319 = vrot.slane %v24, %v318
  %v320 = vlaneseq
  %v321 = vshrl.u32 %v320, 7
  %v322 = vsub.s32 1, %v321
  %v323 = vrot.slane %v24, %v322
  %v324 = vlaneseq
  %v325 = vshrl.u32 %v324, 7
  %v326 = vsub.s32 2, %v325
  %v327 = vrot.slane %v24, %v326
  %v328 = vlaneseq
  %v329 = vshrl.u32 %v328, 7
  %v330 = vsub.s32 3, %v329
  %v331 = vrot.slane %v24, %v330
  %v332 = vlaneseq
  %v333 = vshrl.u32 %v332, 7
  %v334 = vsub.s32 4, %v333
  %v335 = vrot.slane %v24, %v334
  %v336 = vlaneseq
  %v337 = vshrl.u32 %v336, 7
  %v338 = vsub.s32 5, %v337
  %v339 = vrot.slane %v24, %v338
  %v340 = vlaneseq
  %v341 = vshrl.u32 %v340, 7
  %v342 = vsub.s32 6, %v341
  %v343 = vrot.slane %v24, %v342
  %v344 = vlaneseq
  %v345 = vshrl.u32 %v344, 7
  %v346 = vsub.s32 7, %v345
  %v347 = vrot.slane %v24, %v346
  %v364 = vpack.c.bf16 %v287, %v287
  %v365 = vpack.c.bf16 %v291, %v291
  %v366 = vpack.c.bf16 %v295, %v295
  %v367 = vpack.c.bf16 %v299, %v299
  %v368 = vpack.c.bf16 %v303, %v303
  %v369 = vpack.c.bf16 %v307, %v307
  %v370 = vpack.c.bf16 %v311, %v311
  %v371 = vpack.c.bf16 %v315, %v315
  %v372 = vpack.c.bf16 %v319, %v319
  %v373 = vpack.c.bf16 %v323, %v323
  %v374 = vpack.c.bf16 %v327, %v327
  %v375 = vpack.c.bf16 %v331, %v331
  %v376 = vpack.c.bf16 %v335, %v335
  %v377 = vpack.c.bf16 %v339, %v339
  %v378 = vpack.c.bf16 %v343, %v343
  %v379 = vpack.c.bf16 %v347, %v347
  %v636 = vunpack.c.l.b16 %v25
  %v637 = vunpack.c.l.b16 %v26
  %v638 = vunpack.c.l.b16 %v27
  %v639 = vunpack.c.l.b16 %v28
  %v640 = vunpack.c.l.b16 %v29
  %v641 = vunpack.c.l.b16 %v30
  %v642 = vunpack.c.l.b16 %v31
  %v643 = vunpack.c.l.b16 %v32
  %v644 = vunpack.c.l.b16 %v33
  %v645 = vunpack.c.l.b16 %v34
  %v646 = vunpack.c.l.b16 %v35
  %v647 = vunpack.c.l.b16 %v36
  %v648 = vunpack.c.l.b16 %v37
  %v649 = vunpack.c.l.b16 %v38
  %v650 = vunpack.c.l.b16 %v39
  %v651 = vunpack.c.l.b16 %v40
  %v652 = vunpack.c.l.b16 %v41
  %v653 = vunpack.c.l.b16 %v42
  %v654 = vunpack.c.l.b16 %v43
  %v655 = vunpack.c.l.b16 %v44
  %v656 = vunpack.c.l.b16 %v45
  %v657 = vunpack.c.l.b16 %v46
  %v658 = vunpack.c.l.b16 %v47
  %v659 = vunpack.c.l.b16 %v48
  %v660 = vunpack.c.l.b16 %v49
  %v661 = vunpack.c.l.b16 %v50
  %v662 = vunpack.c.l.b16 %v51
  %v663 = vunpack.c.l.b16 %v52
  %v664 = vunpack.c.l.b16 %v53
  %v665 = vunpack.c.l.b16 %v54
  %v666 = vunpack.c.l.b16 %v55
  %v667 = vunpack.c.l.b16 %v56
  %v668 = vunpack.c.l.b16 %v57
  %v669 = vunpack.c.l.b16 %v58
  %v670 = vunpack.c.l.b16 %v59
  %v671 = vunpack.c.l.b16 %v60
  %v672 = vunpack.c.l.b16 %v61
  %v673 = vunpack.c.l.b16 %v62
  %v674 = vunpack.c.l.b16 %v63
  %v675 = vunpack.c.l.b16 %v64
  %v676 = vunpack.c.l.b16 %v65
  %v677 = vunpack.c.l.b16 %v66
  %v678 = vunpack.c.l.b16 %v67
  %v679 = vunpack.c.l.b16 %v68
  %v680 = vunpack.c.l.b16 %v69
  %v681 = vunpack.c.l.b16 %v70
  %v682 = vunpack.c.l.b16 %v71
  %v683 = vunpack.c.l.b16 %v72
  %v684 = vunpack.c.l.b16 %v73
  %v685 = vunpack.c.l.b16 %v74
  %v686 = vunpack.c.l.b16 %v75
  %v687 = vunpack.c.l.b16 %v76
  %v688 = vunpack.c.l.b16 %v77
  %v689 = vunpack.c.l.b16 %v78
  %v690 = vunpack.c.l.b16 %v79
  %v691 = vunpack.c.l.b16 %v80
  %v692 = vunpack.c.l.b16 %v81
  %v693 = vunpack.c.l.b16 %v82
  %v694 = vunpack.c.l.b16 %v83
  %v695 = vunpack.c.l.b16 %v84
  %v696 = vunpack.c.l.b16 %v85
  %v697 = vunpack.c.l.b16 %v86
  %v698 = vunpack.c.l.b16 %v87
  %v699 = vunpack.c.l.b16 %v88
  %v700 = vunpack.c.l.b16 %v89
  %v701 = vunpack.c.l.b16 %v90
  %v702 = vunpack.c.l.b16 %v91
  %v703 = vunpack.c.l.b16 %v92
  %v704 = vunpack.c.l.b16 %v93
  %v705 = vunpack.c.l.b16 %v94
  %v706 = vunpack.c.l.b16 %v95
  %v707 = vunpack.c.l.b16 %v96
  %v708 = vunpack.c.l.b16 %v97
  %v709 = vunpack.c.l.b16 %v98
  %v710 = vunpack.c.l.b16 %v99
  %v711 = vunpack.c.l.b16 %v100
  %v712 = vunpack.c.l.b16 %v101
  %v713 = vunpack.c.l.b16 %v102
  %v714 = vunpack.c.l.b16 %v103
  %v715 = vunpack.c.l.b16 %v104
  %v716 = vunpack.c.l.b16 %v105
  %v717 = vunpack.c.l.b16 %v106
  %v718 = vunpack.c.l.b16 %v107
  %v719 = vunpack.c.l.b16 %v108
  %v720 = vunpack.c.l.b16 %v109
  %v721 = vunpack.c.l.b16 %v110
  %v722 = vunpack.c.l.b16 %v111
  %v723 = vunpack.c.l.b16 %v112
  %v724 = vunpack.c.l.b16 %v113
  %v725 = vunpack.c.l.b16 %v114
  %v726 = vunpack.c.l.b16 %v115
  %v727 = vunpack.c.l.b16 %v116
  %v728 = vunpack.c.l.b16 %v117
  %v729 = vunpack.c.l.b16 %v118
  %v730 = vunpack.c.l.b16 %v119
  %v731 = vunpack.c.l.b16 %v120
  %v732 = vunpack.c.l.b16 %v121
  %v733 = vunpack.c.l.b16 %v122
  %v734 = vunpack.c.l.b16 %v123
  %v735 = vunpack.c.l.b16 %v124
  %v736 = vunpack.c.l.b16 %v125
  %v737 = vunpack.c.l.b16 %v126
  %v738 = vunpack.c.l.b16 %v127
  %v739 = vunpack.c.l.b16 %v128
  %v740 = vunpack.c.l.b16 %v129
  %v741 = vunpack.c.l.b16 %v130
  %v742 = vunpack.c.l.b16 %v131
  %v743 = vunpack.c.l.b16 %v132
  %v744 = vunpack.c.l.b16 %v133
  %v745 = vunpack.c.l.b16 %v134
  %v746 = vunpack.c.l.b16 %v135
  %v747 = vunpack.c.l.b16 %v136
  %v748 = vunpack.c.l.b16 %v137
  %v749 = vunpack.c.l.b16 %v138
  %v750 = vunpack.c.l.b16 %v139
  %v751 = vunpack.c.l.b16 %v140
  %v752 = vunpack.c.l.b16 %v141
  %v753 = vunpack.c.l.b16 %v142
  %v754 = vunpack.c.l.b16 %v143
  %v755 = vunpack.c.l.b16 %v144
  %v756 = vunpack.c.l.b16 %v145
  %v757 = vunpack.c.l.b16 %v146
  %v758 = vunpack.c.l.b16 %v147
  %v759 = vunpack.c.l.b16 %v148
  %v760 = vunpack.c.l.b16 %v149
  %v761 = vunpack.c.l.b16 %v150
  %v762 = vunpack.c.l.b16 %v151
  %v763 = vunpack.c.l.b16 %v152
  %v764 = vunpack.c.l.b16 %v153
  %v765 = vunpack.c.l.b16 %v154
  %v766 = vunpack.c.l.b16 %v155
  %v767 = vunpack.c.l.b16 %v156
  %v768 = vunpack.c.l.b16 %v157
  %v769 = vunpack.c.l.b16 %v158
  %v770 = vunpack.c.l.b16 %v159
  %v771 = vunpack.c.l.b16 %v160
  %v772 = vunpack.c.l.b16 %v161
  %v773 = vunpack.c.l.b16 %v162
  %v774 = vunpack.c.l.b16 %v163
  %v775 = vunpack.c.l.b16 %v164
  %v776 = vunpack.c.l.b16 %v165
  %v777 = vunpack.c.l.b16 %v166
  %v778 = vunpack.c.l.b16 %v167
  %v779 = vunpack.c.l.b16 %v168
  %v780 = vunpack.c.l.b16 %v169
  %v781 = vunpack.c.l.b16 %v170
  %v782 = vunpack.c.l.b16 %v171
  %v783 = vunpack.c.l.b16 %v172
  %v784 = vunpack.c.l.b16 %v173
  %v785 = vunpack.c.l.b16 %v174
  %v786 = vunpack.c.l.b16 %v175
  %v787 = vunpack.c.l.b16 %v176
  %v788 = vunpack.c.l.b16 %v177
  %v789 = vunpack.c.l.b16 %v178
  %v790 = vunpack.c.l.b16 %v179
  %v791 = vunpack.c.l.b16 %v180
  %v792 = vunpack.c.l.b16 %v181
  %v793 = vunpack.c.l.b16 %v182
  %v794 = vunpack.c.l.b16 %v183
  %v795 = vunpack.c.l.b16 %v184
  %v796 = vunpack.c.l.b16 %v185
  %v797 = vunpack.c.l.b16 %v186
  %v798 = vunpack.c.l.b16 %v187
  %v799 = vunpack.c.l.b16 %v188
  %v800 = vunpack.c.l.b16 %v189
  %v801 = vunpack.c.l.b16 %v190
  %v802 = vunpack.c.l.b16 %v191
  %v803 = vunpack.c.l.b16 %v192
  %v804 = vunpack.c.l.b16 %v193
  %v805 = vunpack.c.l.b16 %v194
  %v806 = vunpack.c.l.b16 %v195
  %v807 = vunpack.c.l.b16 %v196
  %v808 = vunpack.c.l.b16 %v197
  %v809 = vunpack.c.l.b16 %v198
  %v810 = vunpack.c.l.b16 %v199
  %v811 = vunpack.c.l.b16 %v200
  %v812 = vunpack.c.l.b16 %v201
  %v813 = vunpack.c.l.b16 %v202
  %v814 = vunpack.c.l.b16 %v203
  %v815 = vunpack.c.l.b16 %v204
  %v816 = vunpack.c.l.b16 %v205
  %v817 = vunpack.c.l.b16 %v206
  %v818 = vunpack.c.l.b16 %v207
  %v819 = vunpack.c.l.b16 %v208
  %v820 = vunpack.c.l.b16 %v209
  %v821 = vunpack.c.l.b16 %v210
  %v822 = vunpack.c.l.b16 %v211
  %v823 = vunpack.c.l.b16 %v212
  %v824 = vunpack.c.l.b16 %v213
  %v825 = vunpack.c.l.b16 %v214
  %v826 = vunpack.c.l.b16 %v215
  %v827 = vunpack.c.l.b16 %v216
  %v828 = vunpack.c.l.b16 %v217
  %v829 = vunpack.c.l.b16 %v218
  %v830 = vunpack.c.l.b16 %v219
  %v831 = vunpack.c.l.b16 %v220
  %v832 = vunpack.c.l.b16 %v221
  %v833 = vunpack.c.l.b16 %v222
  %v834 = vunpack.c.l.b16 %v223
  %v835 = vunpack.c.l.b16 %v224
  %v836 = vunpack.c.l.b16 %v225
  %v837 = vunpack.c.l.b16 %v226
  %v838 = vunpack.c.l.b16 %v227
  %v839 = vunpack.c.l.b16 %v228
  %v840 = vunpack.c.l.b16 %v229
  %v841 = vunpack.c.l.b16 %v230
  %v842 = vunpack.c.l.b16 %v231
  %v843 = vunpack.c.l.b16 %v232
  %v844 = vunpack.c.l.b16 %v233
  %v845 = vunpack.c.l.b16 %v234
  %v846 = vunpack.c.l.b16 %v235
  %v847 = vunpack.c.l.b16 %v236
  %v848 = vunpack.c.l.b16 %v237
  %v849 = vunpack.c.l.b16 %v238
  %v850 = vunpack.c.l.b16 %v239
  %v851 = vunpack.c.l.b16 %v240
  %v852 = vunpack.c.l.b16 %v241
  %v853 = vunpack.c.l.b16 %v242
  %v854 = vunpack.c.l.b16 %v243
  %v855 = vunpack.c.l.b16 %v244
  %v856 = vunpack.c.l.b16 %v245
  %v857 = vunpack.c.l.b16 %v246
  %v858 = vunpack.c.l.b16 %v247
  %v859 = vunpack.c.l.b16 %v248
  %v860 = vunpack.c.l.b16 %v249
  %v861 = vunpack.c.l.b16 %v250
  %v862 = vunpack.c.l.b16 %v251
  %v863 = vunpack.c.l.b16 %v252
  %v864 = vunpack.c.l.b16 %v253
  %v865 = vunpack.c.l.b16 %v254
  %v866 = vunpack.c.l.b16 %v255
  %v867 = vunpack.c.l.b16 %v256
  %v868 = vunpack.c.l.b16 %v257
  %v869 = vunpack.c.l.b16 %v258
  %v870 = vunpack.c.l.b16 %v259
  %v871 = vunpack.c.l.b16 %v260
  %v872 = vunpack.c.l.b16 %v261
  %v873 = vunpack.c.l.b16 %v262
  %v874 = vunpack.c.l.b16 %v263
  %v875 = vunpack.c.l.b16 %v264
  %v876 = vunpack.c.l.b16 %v265
  %v877 = vunpack.c.l.b16 %v266
  %v878 = vunpack.c.l.b16 %v267
  %v879 = vunpack.c.l.b16 %v268
  %v880 = vunpack.c.l.b16 %v269
  %v881 = vunpack.c.l.b16 %v270
  %v882 = vunpack.c.l.b16 %v271
  %v883 = vunpack.c.l.b16 %v272
  %v884 = vunpack.c.l.b16 %v273
  %v885 = vunpack.c.l.b16 %v274
  %v886 = vunpack.c.l.b16 %v275
  %v887 = vunpack.c.l.b16 %v276
  %v888 = vunpack.c.l.b16 %v277
  %v889 = vunpack.c.l.b16 %v278
  %v890 = vunpack.c.l.b16 %v279
  %v891 = vunpack.c.l.b16 %v280
  %v892 = vpack.c.b16 %v637, %v636
  %v893 = vpack.c.b16 %v639, %v638
  %v894 = vpack.c.b16 %v641, %v640
  %v895 = vpack.c.b16 %v643, %v642
  %v896 = vpack.c.b16 %v645, %v644
  %v897 = vpack.c.b16 %v647, %v646
  %v898 = vpack.c.b16 %v649, %v648
  %v899 = vpack.c.b16 %v651, %v650
  %v900 = vpack.c.b16 %v653, %v652
  %v901 = vpack.c.b16 %v655, %v654
  %v902 = vpack.c.b16 %v657, %v656
  %v903 = vpack.c.b16 %v659, %v658
  %v904 = vpack.c.b16 %v661, %v660
  %v905 = vpack.c.b16 %v663, %v662
  %v906 = vpack.c.b16 %v665, %v664
  %v907 = vpack.c.b16 %v667, %v666
  %v908 = vpack.c.b16 %v669, %v668
  %v909 = vpack.c.b16 %v671, %v670
  %v910 = vpack.c.b16 %v673, %v672
  %v911 = vpack.c.b16 %v675, %v674
  %v912 = vpack.c.b16 %v677, %v676
  %v913 = vpack.c.b16 %v679, %v678
  %v914 = vpack.c.b16 %v681, %v680
  %v915 = vpack.c.b16 %v683, %v682
  %v916 = vpack.c.b16 %v685, %v684
  %v917 = vpack.c.b16 %v687, %v686
  %v918 = vpack.c.b16 %v689, %v688
  %v919 = vpack.c.b16 %v691, %v690
  %v920 = vpack.c.b16 %v693, %v692
  %v921 = vpack.c.b16 %v695, %v694
  %v922 = vpack.c.b16 %v697, %v696
  %v923 = vpack.c.b16 %v699, %v698
  %v924 = vpack.c.b16 %v701, %v700
  %v925 = vpack.c.b16 %v703, %v702
  %v926 = vpack.c.b16 %v705, %v704
  %v927 = vpack.c.b16 %v707, %v706
  %v928 = vpack.c.b16 %v709, %v708
  %v929 = vpack.c.b16 %v711, %v710
  %v930 = vpack.c.b16 %v713, %v712
  %v931 = vpack.c.b16 %v715, %v714
  %v932 = vpack.c.b16 %v717, %v716
  %v933 = vpack.c.b16 %v719, %v718
  %v934 = vpack.c.b16 %v721, %v720
  %v935 = vpack.c.b16 %v723, %v722
  %v936 = vpack.c.b16 %v725, %v724
  %v937 = vpack.c.b16 %v727, %v726
  %v938 = vpack.c.b16 %v729, %v728
  %v939 = vpack.c.b16 %v731, %v730
  %v940 = vpack.c.b16 %v733, %v732
  %v941 = vpack.c.b16 %v735, %v734
  %v942 = vpack.c.b16 %v737, %v736
  %v943 = vpack.c.b16 %v739, %v738
  %v944 = vpack.c.b16 %v741, %v740
  %v945 = vpack.c.b16 %v743, %v742
  %v946 = vpack.c.b16 %v745, %v744
  %v947 = vpack.c.b16 %v747, %v746
  %v948 = vpack.c.b16 %v749, %v748
  %v949 = vpack.c.b16 %v751, %v750
  %v950 = vpack.c.b16 %v753, %v752
  %v951 = vpack.c.b16 %v755, %v754
  %v952 = vpack.c.b16 %v757, %v756
  %v953 = vpack.c.b16 %v759, %v758
  %v954 = vpack.c.b16 %v761, %v760
  %v955 = vpack.c.b16 %v763, %v762
  %v956 = vpack.c.b16 %v765, %v764
  %v957 = vpack.c.b16 %v767, %v766
  %v958 = vpack.c.b16 %v769, %v768
  %v959 = vpack.c.b16 %v771, %v770
  %v960 = vpack.c.b16 %v773, %v772
  %v961 = vpack.c.b16 %v775, %v774
  %v962 = vpack.c.b16 %v777, %v776
  %v963 = vpack.c.b16 %v779, %v778
  %v964 = vpack.c.b16 %v781, %v780
  %v965 = vpack.c.b16 %v783, %v782
  %v966 = vpack.c.b16 %v785, %v784
  %v967 = vpack.c.b16 %v787, %v786
  %v968 = vpack.c.b16 %v789, %v788
  %v969 = vpack.c.b16 %v791, %v790
  %v970 = vpack.c.b16 %v793, %v792
  %v971 = vpack.c.b16 %v795, %v794
  %v972 = vpack.c.b16 %v797, %v796
  %v973 = vpack.c.b16 %v799, %v798
  %v974 = vpack.c.b16 %v801, %v800
  %v975 = vpack.c.b16 %v803, %v802
  %v976 = vpack.c.b16 %v805, %v804
  %v977 = vpack.c.b16 %v807, %v806
  %v978 = vpack.c.b16 %v809, %v808
  %v979 = vpack.c.b16 %v811, %v810
  %v980 = vpack.c.b16 %v813, %v812
  %v981 = vpack.c.b16 %v815, %v814
  %v982 = vpack.c.b16 %v817, %v816
  %v983 = vpack.c.b16 %v819, %v818
  %v984 = vpack.c.b16 %v821, %v820
  %v985 = vpack.c.b16 %v823, %v822
  %v986 = vpack.c.b16 %v825, %v824
  %v987 = vpack.c.b16 %v827, %v826
  %v988 = vpack.c.b16 %v829, %v828
  %v989 = vpack.c.b16 %v831, %v830
  %v990 = vpack.c.b16 %v833, %v832
  %v991 = vpack.c.b16 %v835, %v834
  %v992 = vpack.c.b16 %v837, %v836
  %v993 = vpack.c.b16 %v839, %v838
  %v994 = vpack.c.b16 %v841, %v840
  %v995 = vpack.c.b16 %v843, %v842
  %v996 = vpack.c.b16 %v845, %v844
  %v997 = vpack.c.b16 %v847, %v846
  %v998 = vpack.c.b16 %v849, %v848
  %v999 = vpack.c.b16 %v851, %v850
  %v1000 = vpack.c.b16 %v853, %v852
  %v1001 = vpack.c.b16 %v855, %v854
  %v1002 = vpack.c.b16 %v857, %v856
  %v1003 = vpack.c.b16 %v859, %v858
  %v1004 = vpack.c.b16 %v861, %v860
  %v1005 = vpack.c.b16 %v863, %v862
  %v1006 = vpack.c.b16 %v865, %v864
  %v1007 = vpack.c.b16 %v867, %v866
  %v1008 = vpack.c.b16 %v869, %v868
  %v1009 = vpack.c.b16 %v871, %v870
  %v1010 = vpack.c.b16 %v873, %v872
  %v1011 = vpack.c.b16 %v875, %v874
  %v1012 = vpack.c.b16 %v877, %v876
  %v1013 = vpack.c.b16 %v879, %v878
  %v1014 = vpack.c.b16 %v881, %v880
  %v1015 = vpack.c.b16 %v883, %v882
  %v1016 = vpack.c.b16 %v885, %v884
  %v1017 = vpack.c.b16 %v887, %v886
  %v1018 = vpack.c.b16 %v889, %v888
  %v1019 = vpack.c.b16 %v891, %v890
  %1148 = vmatprep.subr.bf16.mxu0 0
  %1149 = vmatpush1.bf16.msra.mxu0 %v892
  %1150 = vmatprep.subr.bf16.mxu0 0
  %1151 = vmatpush1.bf16.msra.mxu0 %v893
  %1152 = vmatprep.subr.bf16.mxu0 0
  %1153 = vmatpush1.bf16.msra.mxu0 %v894
  %1154 = vmatprep.subr.bf16.mxu0 0
  %1155 = vmatpush1.bf16.msra.mxu0 %v895
  %1156 = vmatprep.subr.bf16.mxu0 0
  %1157 = vmatpush1.bf16.msra.mxu0 %v896
  %1158 = vmatprep.subr.bf16.mxu0 0
  %1159 = vmatpush1.bf16.msra.mxu0 %v897
  %1160 = vmatprep.subr.bf16.mxu0 0
  %1161 = vmatpush1.bf16.msra.mxu0 %v898
  %1162 = vmatprep.subr.bf16.mxu0 0
  %1163 = vmatpush1.bf16.msra.mxu0 %v899
  %1164 = vmatprep.subr.bf16.mxu0 0
  %1165 = vmatpush1.bf16.msra.mxu0 %v900
  %1166 = vmatprep.subr.bf16.mxu0 0
  %1167 = vmatpush1.bf16.msra.mxu0 %v901
  %1168 = vmatprep.subr.bf16.mxu0 0
  %1169 = vmatpush1.bf16.msra.mxu0 %v902
  %1170 = vmatprep.subr.bf16.mxu0 0
  %1171 = vmatpush1.bf16.msra.mxu0 %v903
  %1172 = vmatprep.subr.bf16.mxu0 0
  %1173 = vmatpush1.bf16.msra.mxu0 %v904
  %1174 = vmatprep.subr.bf16.mxu0 0
  %1175 = vmatpush1.bf16.msra.mxu0 %v905
  %1176 = vmatprep.subr.bf16.mxu0 0
  %1177 = vmatpush1.bf16.msra.mxu0 %v906
  %1178 = vmatprep.subr.bf16.mxu0 0
  %1179 = vmatpush1.bf16.msra.mxu0 %v907
  %1180 = vmatprep.mubr.bf16.mxu0 %v365
  %1181 = vmatmul.mubr.bf16.gmra.mrb[0].mxu0 %v364
  %v1182 = vpop.f32.mrb[0].mxu0
  %v1183 = vadd.f32 0.0, %v1182
  %v1184 = vpop.f32.mrb[0].mxu0
  %v1185 = vpop.f32.mrb[0].mxu0
  %v1186 = vpop.f32.mrb[0].mxu0
  %1187 = vdwg.mxu0
  %1188 = vmatprep.subr.bf16.mxu0 0
  %1189 = vmatpush1.bf16.msra.mxu0 %v908
  %1190 = vmatprep.subr.bf16.mxu0 0
  %1191 = vmatpush1.bf16.msra.mxu0 %v909
  %1192 = vmatprep.subr.bf16.mxu0 0
  %1193 = vmatpush1.bf16.msra.mxu0 %v910
  %1194 = vmatprep.subr.bf16.mxu0 0
  %1195 = vmatpush1.bf16.msra.mxu0 %v911
  %1196 = vmatprep.subr.bf16.mxu0 0
  %1197 = vmatpush1.bf16.msra.mxu0 %v912
  %1198 = vmatprep.subr.bf16.mxu0 0
  %1199 = vmatpush1.bf16.msra.mxu0 %v913
  %1200 = vmatprep.subr.bf16.mxu0 0
  %1201 = vmatpush1.bf16.msra.mxu0 %v914
  %1202 = vmatprep.subr.bf16.mxu0 0
  %1203 = vmatpush1.bf16.msra.mxu0 %v915
  %1204 = vmatprep.subr.bf16.mxu0 0
  %1205 = vmatpush1.bf16.msra.mxu0 %v916
  %1206 = vmatprep.subr.bf16.mxu0 0
  %1207 = vmatpush1.bf16.msra.mxu0 %v917
  %1208 = vmatprep.subr.bf16.mxu0 0
  %1209 = vmatpush1.bf16.msra.mxu0 %v918
  %1210 = vmatprep.subr.bf16.mxu0 0
  %1211 = vmatpush1.bf16.msra.mxu0 %v919
  %1212 = vmatprep.subr.bf16.mxu0 0
  %1213 = vmatpush1.bf16.msra.mxu0 %v920
  %1214 = vmatprep.subr.bf16.mxu0 0
  %1215 = vmatpush1.bf16.msra.mxu0 %v921
  %1216 = vmatprep.subr.bf16.mxu0 0
  %1217 = vmatpush1.bf16.msra.mxu0 %v922
  %1218 = vmatprep.subr.bf16.mxu0 0
  %1219 = vmatpush1.bf16.msra.mxu0 %v923
  %1220 = vmatprep.mubr.bf16.mxu0 %v367
  %1221 = vmatmul.mubr.bf16.gmra.mrb[0].mxu0 %v366
  %v1222 = vpop.f32.mrb[0].mxu0
  %v1223 = vadd.f32 %v1183, %v1222
  %v1224 = vpop.f32.mrb[0].mxu0
  %v1225 = vpop.f32.mrb[0].mxu0
  %v1226 = vpop.f32.mrb[0].mxu0
  %1227 = vdwg.mxu0
  %1228 = vmatprep.subr.bf16.mxu0 0
  %1229 = vmatpush1.bf16.msra.mxu0 %v924
  %1230 = vmatprep.subr.bf16.mxu0 0
  %1231 = vmatpush1.bf16.msra.mxu0 %v925
  %1232 = vmatprep.subr.bf16.mxu0 0
  %1233 = vmatpush1.bf16.msra.mxu0 %v926
  %1234 = vmatprep.subr.bf16.mxu0 0
  %1235 = vmatpush1.bf16.msra.mxu0 %v927
  %1236 = vmatprep.subr.bf16.mxu0 0
  %1237 = vmatpush1.bf16.msra.mxu0 %v928
  %1238 = vmatprep.subr.bf16.mxu0 0
  %1239 = vmatpush1.bf16.msra.mxu0 %v929
  %1240 = vmatprep.subr.bf16.mxu0 0
  %1241 = vmatpush1.bf16.msra.mxu0 %v930
  %1242 = vmatprep.subr.bf16.mxu0 0
  %1243 = vmatpush1.bf16.msra.mxu0 %v931
  %1244 = vmatprep.subr.bf16.mxu0 0
  %1245 = vmatpush1.bf16.msra.mxu0 %v932
  %1246 = vmatprep.subr.bf16.mxu0 0
  %1247 = vmatpush1.bf16.msra.mxu0 %v933
  %1248 = vmatprep.subr.bf16.mxu0 0
  %1249 = vmatpush1.bf16.msra.mxu0 %v934
  %1250 = vmatprep.subr.bf16.mxu0 0
  %1251 = vmatpush1.bf16.msra.mxu0 %v935
  %1252 = vmatprep.subr.bf16.mxu0 0
  %1253 = vmatpush1.bf16.msra.mxu0 %v936
  %1254 = vmatprep.subr.bf16.mxu0 0
  %1255 = vmatpush1.bf16.msra.mxu0 %v937
  %1256 = vmatprep.subr.bf16.mxu0 0
  %1257 = vmatpush1.bf16.msra.mxu0 %v938
  %1258 = vmatprep.subr.bf16.mxu0 0
  %1259 = vmatpush1.bf16.msra.mxu0 %v939
  %1260 = vmatprep.mubr.bf16.mxu0 %v369
  %1261 = vmatmul.mubr.bf16.gmra.mrb[0].mxu0 %v368
  %v1262 = vpop.f32.mrb[0].mxu0
  %v1263 = vadd.f32 %v1223, %v1262
  %v1264 = vpop.f32.mrb[0].mxu0
  %v1265 = vpop.f32.mrb[0].mxu0
  %v1266 = vpop.f32.mrb[0].mxu0
  %1267 = vdwg.mxu0
  %1268 = vmatprep.subr.bf16.mxu0 0
  %1269 = vmatpush1.bf16.msra.mxu0 %v940
  %1270 = vmatprep.subr.bf16.mxu0 0
  %1271 = vmatpush1.bf16.msra.mxu0 %v941
  %1272 = vmatprep.subr.bf16.mxu0 0
  %1273 = vmatpush1.bf16.msra.mxu0 %v942
  %1274 = vmatprep.subr.bf16.mxu0 0
  %1275 = vmatpush1.bf16.msra.mxu0 %v943
  %1276 = vmatprep.subr.bf16.mxu0 0
  %1277 = vmatpush1.bf16.msra.mxu0 %v944
  %1278 = vmatprep.subr.bf16.mxu0 0
  %1279 = vmatpush1.bf16.msra.mxu0 %v945
  %1280 = vmatprep.subr.bf16.mxu0 0
  %1281 = vmatpush1.bf16.msra.mxu0 %v946
  %1282 = vmatprep.subr.bf16.mxu0 0
  %1283 = vmatpush1.bf16.msra.mxu0 %v947
  %1284 = vmatprep.subr.bf16.mxu0 0
  %1285 = vmatpush1.bf16.msra.mxu0 %v948
  %1286 = vmatprep.subr.bf16.mxu0 0
  %1287 = vmatpush1.bf16.msra.mxu0 %v949
  %1288 = vmatprep.subr.bf16.mxu0 0
  %1289 = vmatpush1.bf16.msra.mxu0 %v950
  %1290 = vmatprep.subr.bf16.mxu0 0
  %1291 = vmatpush1.bf16.msra.mxu0 %v951
  %1292 = vmatprep.subr.bf16.mxu0 0
  %1293 = vmatpush1.bf16.msra.mxu0 %v952
  %1294 = vmatprep.subr.bf16.mxu0 0
  %1295 = vmatpush1.bf16.msra.mxu0 %v953
  %1296 = vmatprep.subr.bf16.mxu0 0
  %1297 = vmatpush1.bf16.msra.mxu0 %v954
  %1298 = vmatprep.subr.bf16.mxu0 0
  %1299 = vmatpush1.bf16.msra.mxu0 %v955
  %1300 = vmatprep.mubr.bf16.mxu0 %v371
  %1301 = vmatmul.mubr.bf16.gmra.mrb[0].mxu0 %v370
  %v1302 = vpop.f32.mrb[0].mxu0
  %v1303 = vadd.f32 %v1263, %v1302
  %v1304 = vpop.f32.mrb[0].mxu0
  %v1305 = vpop.f32.mrb[0].mxu0
  %v1306 = vpop.f32.mrb[0].mxu0
  %1307 = vdwg.mxu0
  %1308 = vmatprep.subr.bf16.mxu0 0
  %1309 = vmatpush1.bf16.msra.mxu0 %v956
  %1310 = vmatprep.subr.bf16.mxu0 0
  %1311 = vmatpush1.bf16.msra.mxu0 %v957
  %1312 = vmatprep.subr.bf16.mxu0 0
  %1313 = vmatpush1.bf16.msra.mxu0 %v958
  %1314 = vmatprep.subr.bf16.mxu0 0
  %1315 = vmatpush1.bf16.msra.mxu0 %v959
  %1316 = vmatprep.subr.bf16.mxu0 0
  %1317 = vmatpush1.bf16.msra.mxu0 %v960
  %1318 = vmatprep.subr.bf16.mxu0 0
  %1319 = vmatpush1.bf16.msra.mxu0 %v961
  %1320 = vmatprep.subr.bf16.mxu0 0
  %1321 = vmatpush1.bf16.msra.mxu0 %v962
  %1322 = vmatprep.subr.bf16.mxu0 0
  %1323 = vmatpush1.bf16.msra.mxu0 %v963
  %1324 = vmatprep.subr.bf16.mxu0 0
  %1325 = vmatpush1.bf16.msra.mxu0 %v964
  %1326 = vmatprep.subr.bf16.mxu0 0
  %1327 = vmatpush1.bf16.msra.mxu0 %v965
  %1328 = vmatprep.subr.bf16.mxu0 0
  %1329 = vmatpush1.bf16.msra.mxu0 %v966
  %1330 = vmatprep.subr.bf16.mxu0 0
  %1331 = vmatpush1.bf16.msra.mxu0 %v967
  %1332 = vmatprep.subr.bf16.mxu0 0
  %1333 = vmatpush1.bf16.msra.mxu0 %v968
  %1334 = vmatprep.subr.bf16.mxu0 0
  %1335 = vmatpush1.bf16.msra.mxu0 %v969
  %1336 = vmatprep.subr.bf16.mxu0 0
  %1337 = vmatpush1.bf16.msra.mxu0 %v970
  %1338 = vmatprep.subr.bf16.mxu0 0
  %1339 = vmatpush1.bf16.msra.mxu0 %v971
  %1340 = vmatprep.mubr.bf16.mxu0 %v373
  %1341 = vmatmul.mubr.bf16.gmra.mrb[0].mxu0 %v372
  %v1342 = vpop.f32.mrb[0].mxu0
  %v1343 = vadd.f32 %v1303, %v1342
  %v1344 = vpop.f32.mrb[0].mxu0
  %v1345 = vpop.f32.mrb[0].mxu0
  %v1346 = vpop.f32.mrb[0].mxu0
  %1347 = vdwg.mxu0
  %1348 = vmatprep.subr.bf16.mxu0 0
  %1349 = vmatpush1.bf16.msra.mxu0 %v972
  %1350 = vmatprep.subr.bf16.mxu0 0
  %1351 = vmatpush1.bf16.msra.mxu0 %v973
  %1352 = vmatprep.subr.bf16.mxu0 0
  %1353 = vmatpush1.bf16.msra.mxu0 %v974
  %1354 = vmatprep.subr.bf16.mxu0 0
  %1355 = vmatpush1.bf16.msra.mxu0 %v975
  %1356 = vmatprep.subr.bf16.mxu0 0
  %1357 = vmatpush1.bf16.msra.mxu0 %v976
  %1358 = vmatprep.subr.bf16.mxu0 0
  %1359 = vmatpush1.bf16.msra.mxu0 %v977
  %1360 = vmatprep.subr.bf16.mxu0 0
  %1361 = vmatpush1.bf16.msra.mxu0 %v978
  %1362 = vmatprep.subr.bf16.mxu0 0
  %1363 = vmatpush1.bf16.msra.mxu0 %v979
  %1364 = vmatprep.subr.bf16.mxu0 0
  %1365 = vmatpush1.bf16.msra.mxu0 %v980
  %1366 = vmatprep.subr.bf16.mxu0 0
  %1367 = vmatpush1.bf16.msra.mxu0 %v981
  %1368 = vmatprep.subr.bf16.mxu0 0
  %1369 = vmatpush1.bf16.msra.mxu0 %v982
  %1370 = vmatprep.subr.bf16.mxu0 0
  %1371 = vmatpush1.bf16.msra.mxu0 %v983
  %1372 = vmatprep.subr.bf16.mxu0 0
  %1373 = vmatpush1.bf16.msra.mxu0 %v984
  %1374 = vmatprep.subr.bf16.mxu0 0
  %1375 = vmatpush1.bf16.msra.mxu0 %v985
  %1376 = vmatprep.subr.bf16.mxu0 0
  %1377 = vmatpush1.bf16.msra.mxu0 %v986
  %1378 = vmatprep.subr.bf16.mxu0 0
  %1379 = vmatpush1.bf16.msra.mxu0 %v987
  %1380 = vmatprep.mubr.bf16.mxu0 %v375
  %1381 = vmatmul.mubr.bf16.gmra.mrb[0].mxu0 %v374
  %v1382 = vpop.f32.mrb[0].mxu0
  %v1383 = vadd.f32 %v1343, %v1382
  %v1384 = vpop.f32.mrb[0].mxu0
  %v1385 = vpop.f32.mrb[0].mxu0
  %v1386 = vpop.f32.mrb[0].mxu0
  %1387 = vdwg.mxu0
  %1388 = vmatprep.subr.bf16.mxu0 0
  %1389 = vmatpush1.bf16.msra.mxu0 %v988
  %1390 = vmatprep.subr.bf16.mxu0 0
  %1391 = vmatpush1.bf16.msra.mxu0 %v989
  %1392 = vmatprep.subr.bf16.mxu0 0
  %1393 = vmatpush1.bf16.msra.mxu0 %v990
  %1394 = vmatprep.subr.bf16.mxu0 0
  %1395 = vmatpush1.bf16.msra.mxu0 %v991
  %1396 = vmatprep.subr.bf16.mxu0 0
  %1397 = vmatpush1.bf16.msra.mxu0 %v992
  %1398 = vmatprep.subr.bf16.mxu0 0
  %1399 = vmatpush1.bf16.msra.mxu0 %v993
  %1400 = vmatprep.subr.bf16.mxu0 0
  %1401 = vmatpush1.bf16.msra.mxu0 %v994
  %1402 = vmatprep.subr.bf16.mxu0 0
  %1403 = vmatpush1.bf16.msra.mxu0 %v995
  %1404 = vmatprep.subr.bf16.mxu0 0
  %1405 = vmatpush1.bf16.msra.mxu0 %v996
  %1406 = vmatprep.subr.bf16.mxu0 0
  %1407 = vmatpush1.bf16.msra.mxu0 %v997
  %1408 = vmatprep.subr.bf16.mxu0 0
  %1409 = vmatpush1.bf16.msra.mxu0 %v998
  %1410 = vmatprep.subr.bf16.mxu0 0
  %1411 = vmatpush1.bf16.msra.mxu0 %v999
  %1412 = vmatprep.subr.bf16.mxu0 0
  %1413 = vmatpush1.bf16.msra.mxu0 %v1000
  %1414 = vmatprep.subr.bf16.mxu0 0
  %1415 = vmatpush1.bf16.msra.mxu0 %v1001
  %1416 = vmatprep.subr.bf16.mxu0 0
  %1417 = vmatpush1.bf16.msra.mxu0 %v1002
  %1418 = vmatprep.subr.bf16.mxu0 0
  %1419 = vmatpush1.bf16.msra.mxu0 %v1003
  %1420 = vmatprep.mubr.bf16.mxu0 %v377
  %1421 = vmatmul.mubr.bf16.gmra.mrb[0].mxu0 %v376
  %v1422 = vpop.f32.mrb[0].mxu0
  %v1423 = vadd.f32 %v1383, %v1422
  %v1424 = vpop.f32.mrb[0].mxu0
  %v1425 = vpop.f32.mrb[0].mxu0
  %v1426 = vpop.f32.mrb[0].mxu0
  %1427 = vdwg.mxu0
  %1428 = vmatprep.subr.bf16.mxu0 0
  %1429 = vmatpush1.bf16.msra.mxu0 %v1004
  %1430 = vmatprep.subr.bf16.mxu0 0
  %1431 = vmatpush1.bf16.msra.mxu0 %v1005
  %1432 = vmatprep.subr.bf16.mxu0 0
  %1433 = vmatpush1.bf16.msra.mxu0 %v1006
  %1434 = vmatprep.subr.bf16.mxu0 0
  %1435 = vmatpush1.bf16.msra.mxu0 %v1007
  %1436 = vmatprep.subr.bf16.mxu0 0
  %1437 = vmatpush1.bf16.msra.mxu0 %v1008
  %1438 = vmatprep.subr.bf16.mxu0 0
  %1439 = vmatpush1.bf16.msra.mxu0 %v1009
  %1440 = vmatprep.subr.bf16.mxu0 0
  %1441 = vmatpush1.bf16.msra.mxu0 %v1010
  %1442 = vmatprep.subr.bf16.mxu0 0
  %1443 = vmatpush1.bf16.msra.mxu0 %v1011
  %1444 = vmatprep.subr.bf16.mxu0 0
  %1445 = vmatpush1.bf16.msra.mxu0 %v1012
  %1446 = vmatprep.subr.bf16.mxu0 0
  %1447 = vmatpush1.bf16.msra.mxu0 %v1013
  %1448 = vmatprep.subr.bf16.mxu0 0
  %1449 = vmatpush1.bf16.msra.mxu0 %v1014
  %1450 = vmatprep.subr.bf16.mxu0 0
  %1451 = vmatpush1.bf16.msra.mxu0 %v1015
  %1452 = vmatprep.subr.bf16.mxu0 0
  %1453 = vmatpush1.bf16.msra.mxu0 %v1016
  %1454 = vmatprep.subr.bf16.mxu0 0
  %1455 = vmatpush1.bf16.msra.mxu0 %v1017
  %1456 = vmatprep.subr.bf16.mxu0 0
  %1457 = vmatpush1.bf16.msra.mxu0 %v1018
  %1458 = vmatprep.subr.bf16.mxu0 0
  %1459 = vmatpush1.bf16.msra.mxu0 %v1019
  %1460 = vmatprep.mubr.bf16.mxu0 %v379
  %1461 = vmatmul.mubr.bf16.gmra.mrb[0].mxu0 %v378
  %v1462 = vpop.f32.mrb[0].mxu0
  %v1463 = vadd.f32 %v1423, %v1462
  %v1464 = vpop.f32.mrb[0].mxu0
  %v1465 = vpop.f32.mrb[0].mxu0
  %v1466 = vpop.f32.mrb[0].mxu0
  %1467 = vdwg.mxu0
  %v1468 = vadd.f32 %v281, %v1463
  %vm1469 = vcmask 57344
  %1470 = vst.msk [vmem:[#allocation2] sm:$0x1] %vm1469, %v1468
  %v1471 = vld [vmem:[#allocation3] sm:$0x1]
  %v1472 = vmul.f32 %v23, %v23
  %v1473 = vmul.f32 %v24, %v24
  %v1476 = vlaneseq
  %v1477 = vshrl.u32 %v1476, 7
  %v1478 = vsub.s32 0, %v1477
  %v1479 = vrot.slane %v1472, %v1478
  %v1480 = vlaneseq
  %v1481 = vshrl.u32 %v1480, 7
  %v1482 = vsub.s32 1, %v1481
  %v1483 = vrot.slane %v1472, %v1482
  %v1484 = vlaneseq
  %v1485 = vshrl.u32 %v1484, 7
  %v1486 = vsub.s32 2, %v1485
  %v1487 = vrot.slane %v1472, %v1486
  %v1488 = vlaneseq
  %v1489 = vshrl.u32 %v1488, 7
  %v1490 = vsub.s32 3, %v1489
  %v1491 = vrot.slane %v1472, %v1490
  %v1492 = vlaneseq
  %v1493 = vshrl.u32 %v1492, 7
  %v1494 = vsub.s32 4, %v1493
  %v1495 = vrot.slane %v1472, %v1494
  %v1496 = vlaneseq
  %v1497 = vshrl.u32 %v1496, 7
  %v1498 = vsub.s32 5, %v1497
  %v1499 = vrot.slane %v1472, %v1498
  %v1500 = vlaneseq
  %v1501 = vshrl.u32 %v1500, 7
  %v1502 = vsub.s32 6, %v1501
  %v1503 = vrot.slane %v1472, %v1502
  %v1504 = vlaneseq
  %v1505 = vshrl.u32 %v1504, 7
  %v1506 = vsub.s32 7, %v1505
  %v1507 = vrot.slane %v1472, %v1506
  %v1508 = vlaneseq
  %v1509 = vshrl.u32 %v1508, 7
  %v1510 = vsub.s32 0, %v1509
  %v1511 = vrot.slane %v1473, %v1510
  %v1512 = vlaneseq
  %v1513 = vshrl.u32 %v1512, 7
  %v1514 = vsub.s32 1, %v1513
  %v1515 = vrot.slane %v1473, %v1514
  %v1516 = vlaneseq
  %v1517 = vshrl.u32 %v1516, 7
  %v1518 = vsub.s32 2, %v1517
  %v1519 = vrot.slane %v1473, %v1518
  %v1520 = vlaneseq
  %v1521 = vshrl.u32 %v1520, 7
  %v1522 = vsub.s32 3, %v1521
  %v1523 = vrot.slane %v1473, %v1522
  %v1524 = vlaneseq
  %v1525 = vshrl.u32 %v1524, 7
  %v1526 = vsub.s32 4, %v1525
  %v1527 = vrot.slane %v1473, %v1526
  %v1528 = vlaneseq
  %v1529 = vshrl.u32 %v1528, 7
  %v1530 = vsub.s32 5, %v1529
  %v1531 = vrot.slane %v1473, %v1530
  %v1532 = vlaneseq
  %v1533 = vshrl.u32 %v1532, 7
  %v1534 = vsub.s32 6, %v1533
  %v1535 = vrot.slane %v1473, %v1534
  %v1536 = vlaneseq
  %v1537 = vshrl.u32 %v1536, 7
  %v1538 = vsub.s32 7, %v1537
  %v1539 = vrot.slane %v1473, %v1538
  %vm1556 = vcmask 1040384
  %v1557 = vsel %vm1556, %v1479, 0.0
  %v1558 = vsel %vm1556, %v1483, 0.0
  %v1559 = vadd.f32 %v1557, %v1558
  %v1560 = vsel %vm1556, %v1487, 0.0
  %v1561 = vadd.f32 %v1559, %v1560
  %v1562 = vsel %vm1556, %v1491, 0.0
  %v1563 = vadd.f32 %v1561, %v1562
  %v1564 = vsel %vm1556, %v1495, 0.0
  %v1565 = vadd.f32 %v1563, %v1564
  %v1566 = vsel %vm1556, %v1499, 0.0
  %v1567 = vadd.f32 %v1565, %v1566
  %v1568 = vsel %vm1556, %v1503, 0.0
  %v1569 = vadd.f32 %v1567, %v1568
  %v1570 = vsel %vm1556, %v1507, 0.0
  %v1571 = vadd.f32 %v1569, %v1570
  %v1572 = vsel %vm1556, %v1511, 0.0
  %v1573 = vadd.f32 %v1571, %v1572
  %v1574 = vsel %vm1556, %v1515, 0.0
  %v1575 = vadd.f32 %v1573, %v1574
  %v1576 = vsel %vm1556, %v1519, 0.0
  %v1577 = vadd.f32 %v1575, %v1576
  %v1578 = vsel %vm1556, %v1523, 0.0
  %v1579 = vadd.f32 %v1577, %v1578
  %v1580 = vsel %vm1556, %v1527, 0.0
  %v1581 = vadd.f32 %v1579, %v1580
  %v1582 = vsel %vm1556, %v1531, 0.0
  %v1583 = vadd.f32 %v1581, %v1582
  %v1584 = vsel %vm1556, %v1535, 0.0
  %v1585 = vadd.f32 %v1583, %v1584
  %v1586 = vsel %vm1556, %v1539, 0.0
  %v1587 = vadd.f32 %v1585, %v1586
  %1588 = vadd.xlane.f32.xlu0 %v1587
  %v1589 = vpop.xlane.xlu0 %1588
  %v1590 = vrot.slane %v1589, 4
  %v1591 = vadd.f32 %v1589, %v1590
  %v1592 = vrot.slane %v1591, 2
  %v1593 = vadd.f32 %v1591, %v1592
  %v1594 = vrot.slane %v1593, 1
  %v1595 = vadd.f32 %v1593, %v1594
  %s1596 = vtos %v1595
  %v1597 = vstv %s1596
  %v1598 = vadd.f32 %v1471, %v1597
  %vm1599 = vcmask 0
  %1600 = vst.msk [vmem:[#allocation3] sm:$0x1] %vm1599, %v1598
  // Predicated region
  $region18: #{_retrieve.1} parent=0 // pred_check
    %p1601 = pneg %p15
  $region19: #{_retrieve.1} parent=0 // pred_check_branch
    %1603 = sbr.rel (%p1601) target = $region21
  $region20: #{_retrieve.1} parent=0 // pred_region
    %v1604 = vld [vmem:[#allocation3] sm:$0x1]
    %v1605 = vld [vmem:[%s2] sm:$0x1]
    %1607 = vset.pattern.permute.xlu0 0
    %1608 = vperm.xlu0 %1607, %v1604
    %v1609 = vpop.permute.xlu0 %1608
    %v1611 = vlaneseq
    %v1612 = vshrl.u32 %v1611, 7
    %v1613 = vsub.s32 0, %v1612
    %v1614 = vrot.slane %v1609, %v1613
    %v1615 = vmul.f32 %v1614, %v1605
    %v1616 = vmax.f32 %v1615, 1e-16
    %v1617 = vld [vmem:[#allocation2] sm:$0x1]
    %v1618 = vrsqrt.pop %v1616
    %v1619 = vmul.f32 %v1617, %v1618
    %1620 = vst.msk [vmem:[%s3] sm:$0x1] %vm1469, %v1619
  $region21: #{_retrieve.1} parent=0 // pred_fallthru
    _
  // Predicated region
  $region22: #{_retrieve.1} parent=0 // pred_check
    _
  $region23: #{_retrieve.1} parent=0 // pred_check_branch
    %1622 = sbr.rel (0) target = $region25
  $region24: #{_retrieve.1} parent=0 // pred_region
    _
  $region25: #{_retrieve.1} parent=0 // pred_fallthru
    _
  // Predicated region
  $region26: #{_retrieve.1} parent=0 // pred_check
    _
  $region27: #{_retrieve.1} parent=0 // pred_check_branch
    %1624 = sbr.rel (0) target = $region29
  $region28: #{_retrieve.1} parent=0 // pred_region
    _
  $region29: #{_retrieve.1} parent=0 // pred_fallthru
    _

</llo_original>
